<compile_context>
chip_gen: v6e
topology: v6e:2x2x1
jax: 0.10.0
libtpu: 0.0.40
codegen_flags: <defaults>
</compile_context>

<pallas_src>
import math

import jax
import jax.numpy as jnp
from jax.experimental import pallas as pl
from jax.experimental.pallas import tpu as pltpu


def _embedding_kernel(x_ref, w_ref, b_ref, o_ref):
    # x_ref: (tm, Kp)  packed tokens x packed features
    # w_ref: (Kp, Ep)  (block-diagonal) weight, pre-transposed to (in, out)
    # b_ref: (1, Ep)   (tiled) bias
    # o_ref: (tm, Ep)
    acc = jnp.dot(x_ref[...], w_ref[...], preferred_element_type=jnp.float32)
    o_ref[...] = (acc + b_ref[...]).astype(o_ref.dtype)


def _round_up(v, m):
    return (v + m - 1) // m * m


def _lane_pack_factor(K, E, dtype_bytes, max_weight_bytes=2 << 20):
    """Smallest P such that P*K and P*E are multiples of 128 (lane-dense I/O).

    Falls back to 1 if the resulting block-diagonal weight would be too big.
    """
    fk = 128 // math.gcd(K, 128)
    fe = 128 // math.gcd(E, 128)
    P = fk * fe // math.gcd(fk, fe)          # lcm(fk, fe)
    if P > 1 and (P * E) * (P * K) * dtype_bytes > max_weight_bytes:
        return 1
    return P


def pack_embedding_params(weight, bias, io_dtype=jnp.float32):
    """Precompute the lane-packed, pre-transposed weight and tiled bias.

    Call once per weight update and reuse across forward calls (avoids the
    small packing einsum per forward).  io_dtype is the dtype the kernel
    streams x in; set to bf16 only if adjacent ops produce/consume bf16.
    """
    E, K = weight.shape
    P = _lane_pack_factor(K, E, jnp.dtype(io_dtype).itemsize)
    if P > 1:
        # Block-diagonal weight, already transposed to (in, out):
        # w_eff[p*K + k, q*E + e] = delta(p, q) * W[e, k]
        eye = jnp.eye(P, dtype=weight.dtype)
        w_eff = jnp.einsum("pq,ek->pkqe", eye, weight).reshape(P * K, P * E)
        b_eff = jnp.tile(bias, P).reshape(1, P * E)
    else:
        w_eff = weight.T                      # (K, E), no block-diagonal needed
        b_eff = bias.reshape(1, E)
    w_eff = w_eff.astype(io_dtype)
    return P, w_eff, b_eff.astype(jnp.float32)


def _choose_tile_rows(rows, Kp, Ep, dt_bytes):
    """Packed-row tile size: multiple of 8, >= ~4 grid steps, VMEM-safe."""
    if rows <= 8:
        return rows                           # single full-extent block
    stream_budget = 8 * 1024 * 1024           # bytes for x/out double buffers
    tm_vmem = (stream_budget // (2 * 2 * (Kp + Ep) * dt_bytes)) // 8 * 8
    tm_steps = _round_up(pl.cdiv(rows, 4), 8)  # keep >= ~4 grid steps
    return max(8, min(tm_vmem, tm_steps, 2048))


def embedding_layer_forward(x, weight, bias, packed=None):
    """x: (B, N, chunk_len, 2)
    weight: (emb_dim, 2*chunk_len)  (PyTorch Linear layout)
    bias: (emb_dim,)
    packed: optional result of pack_embedding_params (cached across calls)
    returns: (B, N, emb_dim)
    """
    B, N, chunk_len, two = x.shape
    assert two == 2
    K = 2 * chunk_len
    E, K_w = weight.shape
    assert K_w == K
    M = B * N
    dt_bytes = jnp.dtype(x.dtype).itemsize

    if packed is None:
        packed = pack_embedding_params(weight, bias, io_dtype=x.dtype)
    P, w_eff, b_eff = packed
    Kp, Ep = P * K, P * E

    # Flatten exactly like torch .view (row-major, last two dims merged).
    x2d = x.reshape(M, K)

    # Main body: all tokens that fit whole packed rows (no padding, no copy).
    rows = M // P
    M_main = rows * P

    if rows == 0:
        out2d = (x2d @ weight.T + bias).astype(x.dtype)
        return out2d.reshape(B, N, E)

    x_main = x2d if M_main == M else x2d[:M_main]
    x_eff = x_main.reshape(rows, Kp)          # contiguous reshape, no shuffle

    tm = _choose_tile_rows(rows, Kp, Ep, dt_bytes)
    grid_m = pl.cdiv(rows, tm)                # ragged last block is fine

    out = pl.pallas_call(
        _embedding_kernel,
        out_shape=jax.ShapeDtypeStruct((rows, Ep), x.dtype),
        grid_spec=pltpu.PrefetchScalarGridSpec(
            num_scalar_prefetch=0,
            grid=(grid_m,),
            in_specs=[
                pl.BlockSpec((tm, Kp), lambda i: (i, 0)),
                pl.BlockSpec((Kp, Ep), lambda i: (0, 0)),   # VMEM-resident
                pl.BlockSpec((1, Ep), lambda i: (0, 0)),    # VMEM-resident
            ],
            out_specs=pl.BlockSpec((tm, Ep), lambda i: (i, 0)),
        ),
        compiler_params=pltpu.CompilerParams(
            dimension_semantics=("parallel",)),
    )(x_eff, w_eff, b_eff)

    # (rows, P*E) is a contiguous view of (M_main, E): free reshape, no slice.
    out_main = out.reshape(M_main, E)

    if M_main == M:
        return out_main.reshape(B, N, E)

    # Rare ragged tail (< P tokens): tiny plain-JAX epilogue instead of padding.
    tail = (x2d[M_main:] @ weight.T + bias).astype(x.dtype)
    return jnp.concatenate([out_main, tail], axis=0).reshape(B, N, E)


if __name__ == "__main__":
    # Small, module-consistent shapes.
    batch = 2
    chunk_num_plus_1 = 8      # chunk_num + 1
    chunk_len = 16
    emb_dim = 32
    in_features = 2 * chunk_len

    key = jax.random.PRNGKey(0)
    kx, kw, kb = jax.random.split(key, 3)

    x = jax.random.normal(kx, (batch, chunk_num_plus_1, chunk_len, 2),
                          dtype=jnp.float32)

    # Deterministic init mimicking nn.Linear default: U(-1/sqrt(fan_in), ...)
    bound = 1.0 / jnp.sqrt(jnp.float32(in_features))
    weight = jax.random.uniform(kw, (emb_dim, in_features),
                                minval=-bound, maxval=bound, dtype=jnp.float32)
    bias = jax.random.uniform(kb, (emb_dim,),
                              minval=-bound, maxval=bound, dtype=jnp.float32)

    # Pack once (as would happen once per weight update in a real model)…
    packed = pack_embedding_params(weight, bias, io_dtype=x.dtype)
    # …then reuse across forward calls.
    out = embedding_layer_forward(x, weight, bias, packed=packed)
    out = jax.block_until_ready(out)

    # Cross-check against plain-JAX reference of the same math.
    ref = x.reshape(batch, chunk_num_plus_1, -1) @ weight.T + bias
    assert out.shape == (batch, chunk_num_plus_1, emb_dim)
    assert jnp.allclose(out, ref, atol=1e-5, rtol=1e-5)

    print("KERNEL_OK")
</pallas_src>

<mosaic_0001>
module attributes {stable_mosaic.version = 11 : i64} {
  func.func @_embedding_kernel(%arg0: i32, %arg1: memref<4x128xf32, #tpu.memory_space<vmem>>, %arg2: memref<128x128xf32, #tpu.memory_space<vmem>>, %arg3: memref<1x128xf32, #tpu.memory_space<vmem>>, %arg4: memref<4x128xf32, #tpu.memory_space<vmem>>) attributes {dimension_semantics = [#tpu.dimension_semantics<parallel>], iteration_bounds = array<i64: 1>, scalar_prefetch = 0 : i64, scratch_operands = 0 : i64, tpu.core_type = #tpu.core_type<tc>, window_params = [{transform_indices = @transform_0, window_bounds = array<i64: 4, 128>}, {pipeline_mode = #tpu.pipeline_mode<synchronous>, transform_indices = @transform_1, window_bounds = array<i64: 128, 128>}, {pipeline_mode = #tpu.pipeline_mode<synchronous>, transform_indices = @transform_2, window_bounds = array<i64: 1, 128>}, {transform_indices = @transform_3, window_bounds = array<i64: 4, 128>}]} {
    %c0 = arith.constant 0 : index
    %c0_0 = arith.constant 0 : index
    %0 = vector.load %arg1[%c0, %c0_0] : memref<4x128xf32, #tpu.memory_space<vmem>>, vector<4x128xf32>
    %c0_1 = arith.constant 0 : index
    %c0_2 = arith.constant 0 : index
    %1 = vector.load %arg2[%c0_1, %c0_2] : memref<128x128xf32, #tpu.memory_space<vmem>>, vector<128x128xf32>
    %cst = arith.constant dense<0.000000e+00> : vector<4x128xf32>
    %2 = tpu.matmul %0, %1, %cst {dimension_numbers = #tpu.dot_dimension_numbers<[1], [0], [0], [1], [0, 0, 1, 1], [], []>} : vector<4x128xf32>, vector<128x128xf32>, vector<4x128xf32> -> vector<4x128xf32>
    %c0_3 = arith.constant 0 : index
    %c0_4 = arith.constant 0 : index
    %3 = vector.load %arg3[%c0_3, %c0_4] : memref<1x128xf32, #tpu.memory_space<vmem>>, vector<1x128xf32>
    %4 = vector.broadcast %3 : vector<1x128xf32> to vector<4x128xf32>
    %5 = arith.addf %2, %4 : vector<4x128xf32>
    %c0_5 = arith.constant 0 : index
    %c0_6 = arith.constant 0 : index
    %6 = vector.load %arg4[%c0_5, %c0_6] : memref<4x128xf32, #tpu.memory_space<vmem>>, vector<4x128xf32>
    tpu.vector_store %arg4[%c0_5, %c0_6], %5 {strides = array<i32>} : memref<4x128xf32, #tpu.memory_space<vmem>>, vector<4x128xf32>,
    return
  }
  func.func @transform_0(%arg0: i32) -> (i32, i32) {
    %c0_i32 = arith.constant 0 : i32
    %c0_i32_0 = arith.constant 0 : i32
    return %arg0, %c0_i32 : i32, i32
  }
  func.func @transform_1(%arg0: i32) -> (i32, i32) {
    %c0_i32 = arith.constant 0 : i32
    %c0_i32_0 = arith.constant 0 : i32
    %c0_i32_1 = arith.constant 0 : i32
    return %c0_i32, %c0_i32_0 : i32, i32
  }
  func.func @transform_2(%arg0: i32) -> (i32, i32) {
    %c0_i32 = arith.constant 0 : i32
    %c0_i32_0 = arith.constant 0 : i32
    %c0_i32_1 = arith.constant 0 : i32
    return %c0_i32, %c0_i32_0 : i32, i32
  }
  func.func @transform_3(%arg0: i32) -> (i32, i32) {
    %c0_i32 = arith.constant 0 : i32
    %c0_i32_0 = arith.constant 0 : i32
    return %arg0, %c0_i32 : i32, i32
  }
}

</mosaic_0001>

<llo_original>
// kernel: tpu_custom_call.1
$region0: #{tpu_custom_call.1}
  #allocation0 [shape = 'u32[]', space=smem, size = 0x4, offset = 0x4, fixed_abs, tag = 'smem constant byte address 0x4 - core index']
  #allocation1 [shape = 'u32[144,128]{1,0:T(1,128)}', space=vmem, size = 0x12000, scoped, tag = 'internal scratch']
  %s0 = inlined_call_operand.hbm [shape: f32[4,128], index: 0, kind: input, shape index: {}]
  %s1 = inlined_call_operand.hbm [shape: f32[128,128], index: 1, kind: input, shape index: {}]
  %s2 = inlined_call_operand.vmem [shape: f32[1,128], index: 2, kind: input, shape index: {}]
  %s3 = inlined_call_operand.hbm [shape: f32[4,128], index: 3, kind: output, shape index: {}]
  %s4 = sld [smem:[#allocation0]]
  $region30: #{tpu_custom_call.1} parent=0
    _
  %s6 = ssub.s32 1, %s4
  %s7 = scalar_select 0, %s6, %s4
  $region1: #{tpu_custom_call.1} parent=0
    #allocation2 [shape = 'u8[2048]{0}', space=vmem, size = 0x800, scoped, tag = 'input window, operand 0, single buffered']
    #allocation3 [shape = 's32[1]{0}', space=sflag, size = 0x4, scoped, tag = 'scoped memory for tpu_custom_call.1']
    #allocation4 [shape = 's32[1]{0}', space=sflag, size = 0x4, scoped, tag = 'scoped memory for tpu_custom_call.1']
    #allocation5 [shape = 'u8[65536]{0}', space=vmem, size = 0x10000, scoped, tag = 'input window, operand 1, single buffered']
    #allocation6 [shape = 's32[1]{0}', space=sflag, size = 0x4, scoped, tag = 'scoped memory for tpu_custom_call.1']
    #allocation7 [shape = 'u8[2048]{0}', space=vmem, size = 0x800, scoped, tag = 'output window, operand 0, single buffered']
    %8 = vsyncpa [#allocation3], 0
    %9 = vsyncpa [#allocation6], 0
    %10 = vsyncpa [#allocation4], 0
    // Predicated region
    $region2: #{tpu_custom_call.1} parent=1 // pred_check
      _
    $region3: #{tpu_custom_call.1} parent=1 // pred_check_branch
      %12 = sbr.rel (0) target = $region5
    $region4: #{tpu_custom_call.1} parent=1 // pred_region
      %s14 = ssub.s32 64, 64
      %15 = vsyncadd [#allocation3], %s14
      %s17 = sshll.u32 [#allocation2], 4
      %s18 = int_to_ptr.vmem [resolvable:$true] %s17
      %20 = dma.hbm_to_vmem [thread:$0]  %s0, 64, %s18, [#allocation3]
    $region5: #{tpu_custom_call.1} parent=1 // pred_fallthru
      _
    // Predicated region
    $region6: #{tpu_custom_call.1} parent=1 // pred_check
      _
    $region7: #{tpu_custom_call.1} parent=1 // pred_check_branch
      %22 = sbr.rel (0) target = $region9
    $region8: #{tpu_custom_call.1} parent=1 // pred_region
      %s24 = ssub.s32 2048, 2048
      %25 = vsyncadd [#allocation6], %s24
      %s26 = sshll.u32 [#allocation5], 4
      %s27 = int_to_ptr.vmem [resolvable:$true] %s26
      %32 = dma.hbm_to_vmem [thread:$0]  %s1, 2048, %s27, [#allocation6], 128, 128, 8
    $region9: #{tpu_custom_call.1} parent=1 // pred_fallthru
      _
    // Predicated region
    $region10: #{tpu_custom_call.1} parent=1 // pred_check
      _
    $region11: #{tpu_custom_call.1} parent=1 // pred_check_branch
      %34 = sbr.rel (0) target = $region13
    $region12: #{tpu_custom_call.1} parent=1 // pred_region
      _
    $region13: #{tpu_custom_call.1} parent=1 // pred_fallthru
      _
    // Predicated region
    $region14: #{tpu_custom_call.1} parent=1 // pred_check
      _
    $region15: #{tpu_custom_call.1} parent=1 // pred_check_branch
      %36 = sbr.rel (0) target = $region17
    $region16: #{tpu_custom_call.1} parent=1 // pred_region
      %37 = dma.done [#allocation3], 64
    $region17: #{tpu_custom_call.1} parent=1 // pred_fallthru
      _
    // Predicated region
    $region18: #{tpu_custom_call.1} parent=1 // pred_check
      _
    $region19: #{tpu_custom_call.1} parent=1 // pred_check_branch
      %39 = sbr.rel (0) target = $region21
    $region20: #{tpu_custom_call.1} parent=1 // pred_region
      %40 = dma.done [#allocation6], 2048
    $region21: #{tpu_custom_call.1} parent=1 // pred_fallthru
      _
    %v41 = vld [vmem:[#allocation2] sm:$0xf]
    %v42 = vld [vmem:[#allocation5] sm:$0xff]
    %v43 = vld [vmem:[#allocation5 + $0x8] sm:$0xff]
    %v44 = vld [vmem:[#allocation5 + $0x10] sm:$0xff]
    %v45 = vld [vmem:[#allocation5 + $0x18] sm:$0xff]
    %v46 = vld [vmem:[#allocation5 + $0x20] sm:$0xff]
    %v47 = vld [vmem:[#allocation5 + $0x28] sm:$0xff]
    %v48 = vld [vmem:[#allocation5 + $0x30] sm:$0xff]
    %v49 = vld [vmem:[#allocation5 + $0x38] sm:$0xff]
    %v50 = vld [vmem:[#allocation5 + $0x40] sm:$0xff]
    %v51 = vld [vmem:[#allocation5 + $0x48] sm:$0xff]
    %v52 = vld [vmem:[#allocation5 + $0x50] sm:$0xff]
    %v53 = vld [vmem:[#allocation5 + $0x58] sm:$0xff]
    %v54 = vld [vmem:[#allocation5 + $0x60] sm:$0xff]
    %v55 = vld [vmem:[#allocation5 + $0x68] sm:$0xff]
    %v56 = vld [vmem:[#allocation5 + $0x70] sm:$0xff]
    %v57 = vld [vmem:[#allocation5 + $0x78] sm:$0xff]
    %v58 = vld [vmem:[%s2] sm:$0x1]
    %v60 = vlaneseq
    %v61 = vshrl.u32 %v60, 7
    %v62 = vsub.s32 0, %v61
    %v63 = vrot.slane %v58, %v62
    %65 = vmatprep.subr.mxu0 0.0
    %66 = vmatpush1.msra.mxu0 %v57
    %67 = vmatprep.subr.mxu0 0.0
    %68 = vmatpush1.msra.mxu0 %v56
    %69 = vmatprep.subr.mxu0 0.0
    %70 = vmatpush1.msra.mxu0 %v55
    %71 = vmatprep.subr.mxu0 0.0
    %72 = vmatpush1.msra.mxu0 %v54
    %73 = vmatprep.subr.mxu0 0.0
    %74 = vmatpush1.msra.mxu0 %v53
    %75 = vmatprep.subr.mxu0 0.0
    %76 = vmatpush1.msra.mxu0 %v52
    %77 = vmatprep.subr.mxu0 0.0
    %78 = vmatpush1.msra.mxu0 %v51
    %79 = vmatprep.subr.mxu0 0.0
    %80 = vmatpush1.msra.mxu0 %v50
    %81 = vmatprep.subr.mxu0 0.0
    %82 = vmatpush1.msra.mxu0 %v49
    %83 = vmatprep.subr.mxu0 0.0
    %84 = vmatpush1.msra.mxu0 %v48
    %85 = vmatprep.subr.mxu0 0.0
    %86 = vmatpush1.msra.mxu0 %v47
    %87 = vmatprep.subr.mxu0 0.0
    %88 = vmatpush1.msra.mxu0 %v46
    %89 = vmatprep.subr.mxu0 0.0
    %90 = vmatpush1.msra.mxu0 %v45
    %91 = vmatprep.subr.mxu0 0.0
    %92 = vmatpush1.msra.mxu0 %v44
    %93 = vmatprep.subr.mxu0 0.0
    %94 = vmatpush1.msra.mxu0 %v43
    %95 = vmatprep.subr.mxu0 0.0
    %96 = vmatpush1.msra.mxu0 %v42
    %97 = vmatprep.subr.mxu0 0.0
    %98 = vmatpush2.msra.mxu0 0.0
    %99 = vmatprep.subr.mxu0 0.0
    %100 = vmatpush2.msra.mxu0 0.0
    %101 = vmatprep.subr.mxu0 0.0
    %102 = vmatpush2.msra.mxu0 0.0
    %103 = vmatprep.subr.mxu0 0.0
    %104 = vmatpush2.msra.mxu0 0.0
    %105 = vmatprep.subr.mxu0 0.0
    %106 = vmatpush2.msra.mxu0 0.0
    %107 = vmatprep.subr.mxu0 0.0
    %108 = vmatpush2.msra.mxu0 0.0
    %109 = vmatprep.subr.mxu0 0.0
    %110 = vmatpush2.msra.mxu0 0.0
    %111 = vmatprep.subr.mxu0 0.0
    %112 = vmatpush2.msra.mxu0 0.0
    %113 = vmatprep.subr.mxu0 0.0
    %114 = vmatpush2.msra.mxu0 0.0
    %115 = vmatprep.subr.mxu0 0.0
    %116 = vmatpush2.msra.mxu0 0.0
    %117 = vmatprep.subr.mxu0 0.0
    %118 = vmatpush2.msra.mxu0 0.0
    %119 = vmatprep.subr.mxu0 0.0
    %120 = vmatpush2.msra.mxu0 0.0
    %121 = vmatprep.subr.mxu0 0.0
    %122 = vmatpush2.msra.mxu0 0.0
    %123 = vmatprep.subr.mxu0 0.0
    %124 = vmatpush2.msra.mxu0 0.0
    %125 = vmatprep.subr.mxu0 0.0
    %126 = vmatpush2.msra.mxu0 0.0
    %127 = vmatprep.subr.mxu0 0.0
    %128 = vmatpush2.msra.mxu0 0.0
    %129 = vmatprep.mubr.f32.mxu0 0.0
    %130 = vmatmul.mubr.f32.gmra.mxu0 %v41
    %v131 = vpop.f32.mrf.mxu0
    %v132 = vadd.f32 %v63, %v131
    %v133 = vpop.f32.mrf.mxu0
    %134 = vdwg.mxu0
    %135 = vst [vmem:[#allocation7] sm:$0xf] %v132
    // Predicated region
    $region22: #{tpu_custom_call.1} parent=1 // pred_check
      _
    $region23: #{tpu_custom_call.1} parent=1 // pred_check_branch
      %137 = sbr.rel (0) target = $region25
    $region24: #{tpu_custom_call.1} parent=1 // pred_region
      %s139 = ssub.s32 64, 64
      %140 = vsyncadd [#allocation4], %s139
      %s142 = sshll.u32 [#allocation7], 4
      %s143 = int_to_ptr.vmem [resolvable:$true] %s142
      %145 = dma.vmem_to_hbm [thread:$0]  %s143, 64, %s3, [#allocation4]
    $region25: #{tpu_custom_call.1} parent=1 // pred_fallthru
      _
    // Predicated region
    $region26: #{tpu_custom_call.1} parent=1 // pred_check
      _
    $region27: #{tpu_custom_call.1} parent=1 // pred_check_branch
      %147 = sbr.rel (0) target = $region29
    $region28: #{tpu_custom_call.1} parent=1 // pred_region
      %148 = dma.done [#allocation4], 64
    $region29: #{tpu_custom_call.1} parent=1 // pred_fallthru
      _
    %149 = vsyncpa [#allocation3], 1
    %150 = vsyncpa [#allocation6], 1
    %151 = vsyncpa [#allocation4], 1

</llo_original>
